<compile_context>
chip_gen: v5e
topology: v5e:2x2
jax: 0.10.0
libtpu: 0.0.40
codegen_flags: <defaults>
</compile_context>

<pallas_src>
import functools

import jax
import jax.numpy as jnp
from jax.experimental import pallas as pl
from jax.experimental.pallas import tpu as pltpu


# -----------------------------------------------------------------------------
# Kernel: fused ([Linear+Tanh] x 3 -> Linear), transposed (features, batch)
# layout so the batch occupies the 128-lane dimension.
#   dataT_ref : (in_N, TL)          compute dtype (f32 or bf16)
#   wK_ref    : (out_feat, in_feat) compute dtype (PyTorch nn.Linear layout)
#   b_ref     : (3m+out_N, 1) f32   packed biases (norm folded into bias 0)
#   o_ref     : (out_N, TL) f32     lane-dense output slab
# MXU accumulation is f32; bias-add + tanh are f32 (safe on v5e).
# -----------------------------------------------------------------------------
def _network_kernel(dataT_ref, w0_ref, w1_ref, w2_ref, w3_ref, b_ref, o_ref,
                    *, m, out_N):
    cdt = dataT_ref.dtype

    b0 = b_ref[0:m, :]                       # (m, 1)      f32
    b1 = b_ref[m:2 * m, :]                   # (m, 1)
    b2 = b_ref[2 * m:3 * m, :]               # (m, 1)
    b3 = b_ref[3 * m:3 * m + out_N, :]       # (out_N, 1)

    x = dataT_ref[...]                                                    # (in_N, TL)
    h = jnp.tanh(jnp.dot(w0_ref[...], x,
                         preferred_element_type=jnp.float32) + b0)        # (m, TL) f32
    h = jnp.tanh(jnp.dot(w1_ref[...], h.astype(cdt),
                         preferred_element_type=jnp.float32) + b1)        # (m, TL)
    h = jnp.tanh(jnp.dot(w2_ref[...], h.astype(cdt),
                         preferred_element_type=jnp.float32) + b2)        # (m, TL)
    out = jnp.dot(w3_ref[...], h.astype(cdt),
                  preferred_element_type=jnp.float32) + b3                # (out_N, TL)
    o_ref[...] = out.astype(o_ref.dtype)


# -----------------------------------------------------------------------------
# Best-effort, safe chip query (falls back to conservative defaults).
# -----------------------------------------------------------------------------
def _tpu_chip_info():
    """Returns (bf16_matmul_inputs_by_default, tensorcores_per_chip)."""
    try:
        kind = (jax.devices()[0].device_kind or "").lower()
    except Exception:
        return False, 2
    bf16_default = ("v6" in kind) or ("v7" in kind) or ("7x" in kind)
    two_tc = any(t in kind for t in ("v7", "7x", "v4", "v5p", "v3", "v2"))
    return bf16_default, (2 if two_tc else 1)


# -----------------------------------------------------------------------------
# Tile heuristic: big tiles (amortize ~0.35us/grid-step), but keep >=2 parallel
# steps on 2-TC chips so both TensorCores get work.
# -----------------------------------------------------------------------------
def _auto_tile_lanes(B_pad, tc_per_chip):
    assert B_pad % 128 == 0
    cap = 16384 if tc_per_chip <= 1 else 8192
    if tc_per_chip >= 2 and B_pad >= 256:
        cap = min(cap, (B_pad // 256) * 128)   # >= 2 grid steps
    t = min(cap, B_pad)
    t = max(128, (t // 128) * 128)
    while B_pad % t != 0:                      # keep tiles uniform / lane-dense
        t -= 128
    return t


# -----------------------------------------------------------------------------
# Wrapper
# -----------------------------------------------------------------------------
def network_forward(x, y, mu, std, params, *, tile_lanes=None, compute_dtype=None):
    """x, y: (B, 1); mu/std: (1, in_N); params: [(W, b), ...] in PyTorch layout
    (W: (out_features, in_features), b: (out_features,)).  Returns (B, out_N)."""
    bf16_default, tc_per_chip = _tpu_chip_info()
    if compute_dtype is None:
        compute_dtype = jnp.bfloat16 if bf16_default else jnp.float32

    B = x.shape[0]
    (w0, b0), (w1, b1), (w2, b2), (w3, b3) = params
    m = w0.shape[0]
    in_N = w0.shape[1]
    out_N = w3.shape[0]

    # --- build (in_N, B) data without a feature-concat + transpose relayout ---
    dataT = jnp.concatenate([x.reshape(1, B), y.reshape(1, B)], axis=0)   # (in_N, B)

    # --- fold (data - mu) / std into layer 0 (exact affine compose, f32) ---
    inv_std = 1.0 / std                                       # (1, in_N)
    w0f = w0 * inv_std                                        # (m, in_N)
    b0f = b0.reshape(m, 1) - w0f @ mu.reshape(in_N, 1)        # (m, 1)
    b_packed = jnp.concatenate(
        [b0f, b1.reshape(m, 1), b2.reshape(m, 1), b3.reshape(out_N, 1)],
        axis=0).astype(jnp.float32)                           # (3m+out_N, 1)

    # --- pad batch to a multiple of 128 lanes (lane-dense, unmasked stores) ---
    B_pad = pl.cdiv(B, 128) * 128
    if B_pad != B:
        dataT = jnp.pad(dataT, ((0, 0), (0, B_pad - B)))

    dataT = dataT.astype(compute_dtype)
    w0c, w1c, w2c, w3c = (w.astype(compute_dtype) for w in (w0f, w1, w2, w3))

    if tile_lanes is None:
        tile_lanes = _auto_tile_lanes(B_pad, tc_per_chip)
    assert B_pad % tile_lanes == 0 and tile_lanes % 128 == 0
    grid = (B_pad // tile_lanes,)

    full = lambda i: (0, 0)   # weights / packed bias: one block, resident across grid

    grid_spec = pltpu.PrefetchScalarGridSpec(
        num_scalar_prefetch=0,
        grid=grid,
        in_specs=[
            pl.BlockSpec((in_N, tile_lanes), lambda i: (0, i)),   # dataT tile
            pl.BlockSpec((m, in_N), full),                        # layer 0 (norm folded)
            pl.BlockSpec((m, m), full),                           # layer 1
            pl.BlockSpec((m, m), full),                           # layer 2
            pl.BlockSpec((out_N, m), full),                       # output layer
            pl.BlockSpec((3 * m + out_N, 1), full),               # packed biases (f32)
        ],
        out_specs=pl.BlockSpec((out_N, tile_lanes), lambda i: (0, i)),
    )

    flops = 2 * B_pad * (in_N * m + 2 * m * m + m * out_N)
    cost = pl.CostEstimate(
        flops=int(flops),
        transcendentals=int(3 * m * B_pad),
        bytes_accessed=int(dataT.dtype.itemsize * B_pad * in_N
                           + 4 * B_pad * out_N
                           + dataT.dtype.itemsize * (in_N * m + 2 * m * m + m * out_N)
                           + 4 * (3 * m + out_N)),
    )

    kernel = functools.partial(_network_kernel, m=m, out_N=out_N)

    outT = pl.pallas_call(
        kernel,
        out_shape=jax.ShapeDtypeStruct((out_N, B_pad), jnp.float32),
        grid_spec=grid_spec,
        compiler_params=pltpu.CompilerParams(
            dimension_semantics=("parallel",)),
        cost_estimate=cost,
    )(dataT, w0c, w1c, w2c, w3c, b_packed)

    return outT[:, :B].T                                      # (B, out_N)


# -----------------------------------------------------------------------------
# Deterministic parameter construction (PyTorch nn.Linear default-init style,
# stored in PyTorch layout: W (out, in), b (out,)).
# -----------------------------------------------------------------------------
def make_linear_params(key, fan_in, fan_out):
    kw, kb = jax.random.split(key)
    bound = 1.0 / jnp.sqrt(fan_in)
    w = jax.random.uniform(kw, (fan_out, fan_in), jnp.float32, -bound, bound)
    b = jax.random.uniform(kb, (fan_out,), jnp.float32, -bound, bound)
    return w, b


def reference_forward(x, y, mu, std, params):
    data = (jnp.concatenate([x, y], axis=1) - mu) / std
    h = data
    for (w, b) in params[:-1]:
        h = jnp.tanh(h @ w.T + b)
    w, b = params[-1]
    return h @ w.T + b


if __name__ == "__main__":
    # Network(in_N=2, m=32, H_Layer=3, out_N=1) -> layers: 2->32, 32->32, 32->32, 32->1
    in_N, m, H_Layer, out_N = 2, 32, 3, 1
    B = 200   # deliberately NOT a multiple of 128 -> exercises pad+slice path

    key = jax.random.PRNGKey(0)
    k_x, k_y, k0, k1, k2, k3 = jax.random.split(key, 6)

    x = jax.random.normal(k_x, (B, 1), jnp.float32)
    y = jax.random.normal(k_y, (B, 1), jnp.float32)

    mu = jnp.array([[0.5, -0.25]], dtype=jnp.float32)    # kwargs['mean']
    std = jnp.array([[1.5, 2.0]], dtype=jnp.float32)     # kwargs['stdev']

    params = [
        make_linear_params(k0, in_N, m),    # ConventBlock(in_N, m)
        make_linear_params(k1, m, m),       # ConventBlock(m, m)
        make_linear_params(k2, m, m),       # ConventBlock(m, m)
        make_linear_params(k3, m, out_N),   # final nn.Linear(m, out_N)
    ]

    ref = reference_forward(x, y, mu, std, params)

    # f32 path: tight tolerance (works on every generation).
    out_f32 = jax.block_until_ready(
        network_forward(x, y, mu, std, params, compute_dtype=jnp.float32))
    assert out_f32.shape == (B, out_N)
    assert jnp.allclose(out_f32, ref, atol=1e-5, rtol=1e-5), "f32 mismatch vs reference"

    # bf16-matmul-inputs path (default on v6e/v7x): loose tolerance vs f32 ref.
    out_bf16 = jax.block_until_ready(
        network_forward(x, y, mu, std, params, compute_dtype=jnp.bfloat16))
    assert out_bf16.shape == (B, out_N)
    assert jnp.allclose(out_bf16, ref, atol=5e-2, rtol=5e-2), "bf16 mismatch vs reference"

    # Auto (generation-aware) default path.
    out_auto = jax.block_until_ready(network_forward(x, y, mu, std, params))
    assert out_auto.shape == (B, out_N)
    assert jnp.allclose(out_auto, ref, atol=5e-2, rtol=5e-2), "auto-dtype mismatch vs reference"

    print("KERNEL_OK")
</pallas_src>

<mosaic_0001>
module attributes {stable_mosaic.version = 11 : i64} {
  func.func @_network_kernel(%arg0: i32, %arg1: memref<2x256xf32, #tpu.memory_space<vmem>>, %arg2: memref<32x2xf32, #tpu.memory_space<vmem>>, %arg3: memref<32x32xf32, #tpu.memory_space<vmem>>, %arg4: memref<32x32xf32, #tpu.memory_space<vmem>>, %arg5: memref<1x32xf32, #tpu.memory_space<vmem>>, %arg6: memref<97x1xf32, #tpu.memory_space<vmem>>, %arg7: memref<1x256xf32, #tpu.memory_space<vmem>>) attributes {dimension_semantics = [#tpu.dimension_semantics<parallel>], iteration_bounds = array<i64: 1>, scalar_prefetch = 0 : i64, scratch_operands = 0 : i64, tpu.core_type = #tpu.core_type<tc>, window_params = [{transform_indices = @transform_0, window_bounds = array<i64: 2, 256>}, {pipeline_mode = #tpu.pipeline_mode<synchronous>, transform_indices = @transform_1, window_bounds = array<i64: 32, 2>}, {pipeline_mode = #tpu.pipeline_mode<synchronous>, transform_indices = @transform_2, window_bounds = array<i64: 32, 32>}, {pipeline_mode = #tpu.pipeline_mode<synchronous>, transform_indices = @transform_3, window_bounds = array<i64: 32, 32>}, {pipeline_mode = #tpu.pipeline_mode<synchronous>, transform_indices = @transform_4, window_bounds = array<i64: 1, 32>}, {pipeline_mode = #tpu.pipeline_mode<synchronous>, transform_indices = @transform_5, window_bounds = array<i64: 97, 1>}, {transform_indices = @transform_6, window_bounds = array<i64: 1, 256>}]} {
    %c0 = arith.constant 0 : index
    %c0_0 = arith.constant 0 : index
    %0 = vector.load %arg6[%c0, %c0_0] : memref<97x1xf32, #tpu.memory_space<vmem>>, vector<32x1xf32>
    %c32 = arith.constant 32 : index
    %c0_1 = arith.constant 0 : index
    %1 = vector.load %arg6[%c32, %c0_1] : memref<97x1xf32, #tpu.memory_space<vmem>>, vector<32x1xf32>
    %c64 = arith.constant 64 : index
    %c0_2 = arith.constant 0 : index
    %2 = vector.load %arg6[%c64, %c0_2] : memref<97x1xf32, #tpu.memory_space<vmem>>, vector<32x1xf32>
    %c96 = arith.constant 96 : index
    %c0_3 = arith.constant 0 : index
    %3 = vector.load %arg6[%c96, %c0_3] : memref<97x1xf32, #tpu.memory_space<vmem>>, vector<1x1xf32>
    %c0_4 = arith.constant 0 : index
    %c0_5 = arith.constant 0 : index
    %4 = vector.load %arg1[%c0_4, %c0_5] : memref<2x256xf32, #tpu.memory_space<vmem>>, vector<2x256xf32>
    %c0_6 = arith.constant 0 : index
    %c0_7 = arith.constant 0 : index
    %5 = vector.load %arg2[%c0_6, %c0_7] : memref<32x2xf32, #tpu.memory_space<vmem>>, vector<32x2xf32>
    %cst = arith.constant dense<0.000000e+00> : vector<32x256xf32>
    %6 = tpu.matmul %5, %4, %cst {dimension_numbers = #tpu.dot_dimension_numbers<[1], [0], [0], [1], [0, 0, 1, 1], [], []>} : vector<32x2xf32>, vector<2x256xf32>, vector<32x256xf32> -> vector<32x256xf32>
    %7 = vector.broadcast %0 : vector<32x1xf32> to vector<32x256xf32>
    %8 = arith.addf %6, %7 : vector<32x256xf32>
    %9 = math.tanh %8 : vector<32x256xf32>
    %c0_8 = arith.constant 0 : index
    %c0_9 = arith.constant 0 : index
    %10 = vector.load %arg3[%c0_8, %c0_9] : memref<32x32xf32, #tpu.memory_space<vmem>>, vector<32x32xf32>
    %cst_10 = arith.constant dense<0.000000e+00> : vector<32x256xf32>
    %11 = tpu.matmul %10, %9, %cst_10 {dimension_numbers = #tpu.dot_dimension_numbers<[1], [0], [0], [1], [0, 0, 1, 1], [], []>} : vector<32x32xf32>, vector<32x256xf32>, vector<32x256xf32> -> vector<32x256xf32>
    %12 = vector.broadcast %1 : vector<32x1xf32> to vector<32x256xf32>
    %13 = arith.addf %11, %12 : vector<32x256xf32>
    %14 = math.tanh %13 : vector<32x256xf32>
    %c0_11 = arith.constant 0 : index
    %c0_12 = arith.constant 0 : index
    %15 = vector.load %arg4[%c0_11, %c0_12] : memref<32x32xf32, #tpu.memory_space<vmem>>, vector<32x32xf32>
    %cst_13 = arith.constant dense<0.000000e+00> : vector<32x256xf32>
    %16 = tpu.matmul %15, %14, %cst_13 {dimension_numbers = #tpu.dot_dimension_numbers<[1], [0], [0], [1], [0, 0, 1, 1], [], []>} : vector<32x32xf32>, vector<32x256xf32>, vector<32x256xf32> -> vector<32x256xf32>
    %17 = vector.broadcast %2 : vector<32x1xf32> to vector<32x256xf32>
    %18 = arith.addf %16, %17 : vector<32x256xf32>
    %19 = math.tanh %18 : vector<32x256xf32>
    %c0_14 = arith.constant 0 : index
    %c0_15 = arith.constant 0 : index
    %20 = vector.load %arg5[%c0_14, %c0_15] : memref<1x32xf32, #tpu.memory_space<vmem>>, vector<1x32xf32>
    %cst_16 = arith.constant dense<0.000000e+00> : vector<1x256xf32>
    %21 = tpu.matmul %20, %19, %cst_16 {dimension_numbers = #tpu.dot_dimension_numbers<[1], [0], [0], [1], [0, 0, 1, 1], [], []>} : vector<1x32xf32>, vector<32x256xf32>, vector<1x256xf32> -> vector<1x256xf32>
    %22 = vector.broadcast %3 : vector<1x1xf32> to vector<1x256xf32>
    %23 = arith.addf %21, %22 : vector<1x256xf32>
    %c0_17 = arith.constant 0 : index
    %c0_18 = arith.constant 0 : index
    %24 = vector.load %arg7[%c0_17, %c0_18] : memref<1x256xf32, #tpu.memory_space<vmem>>, vector<1x256xf32>
    tpu.vector_store %arg7[%c0_17, %c0_18], %23 {strides = array<i32>} : memref<1x256xf32, #tpu.memory_space<vmem>>, vector<1x256xf32>,
    return
  }
  func.func @transform_0(%arg0: i32) -> (i32, i32) {
    %c0_i32 = arith.constant 0 : i32
    %c0_i32_0 = arith.constant 0 : i32
    return %c0_i32, %arg0 : i32, i32
  }
  func.func @transform_1(%arg0: i32) -> (i32, i32) {
    %c0_i32 = arith.constant 0 : i32
    %c0_i32_0 = arith.constant 0 : i32
    %c0_i32_1 = arith.constant 0 : i32
    return %c0_i32, %c0_i32_0 : i32, i32
  }
  func.func @transform_2(%arg0: i32) -> (i32, i32) {
    %c0_i32 = arith.constant 0 : i32
    %c0_i32_0 = arith.constant 0 : i32
    %c0_i32_1 = arith.constant 0 : i32
    return %c0_i32, %c0_i32_0 : i32, i32
  }
  func.func @transform_3(%arg0: i32) -> (i32, i32) {
    %c0_i32 = arith.constant 0 : i32
    %c0_i32_0 = arith.constant 0 : i32
    %c0_i32_1 = arith.constant 0 : i32
    return %c0_i32, %c0_i32_0 : i32, i32
  }
  func.func @transform_4(%arg0: i32) -> (i32, i32) {
    %c0_i32 = arith.constant 0 : i32
    %c0_i32_0 = arith.constant 0 : i32
    %c0_i32_1 = arith.constant 0 : i32
    return %c0_i32, %c0_i32_0 : i32, i32
  }
  func.func @transform_5(%arg0: i32) -> (i32, i32) {
    %c0_i32 = arith.constant 0 : i32
    %c0_i32_0 = arith.constant 0 : i32
    %c0_i32_1 = arith.constant 0 : i32
    return %c0_i32, %c0_i32_0 : i32, i32
  }
  func.func @transform_6(%arg0: i32) -> (i32, i32) {
    %c0_i32 = arith.constant 0 : i32
    %c0_i32_0 = arith.constant 0 : i32
    return %c0_i32, %arg0 : i32, i32
  }
}

</mosaic_0001>

<llo_original>
// kernel: tpu_custom_call.1
$region0: #{tpu_custom_call.1}
  #allocation0 [shape = 'u32[]', space=smem, size = 0x4, offset = 0x4, fixed_abs, tag = 'smem constant byte address 0x4 - core index']
  #allocation1 [shape = 'u32[72,128]{1,0:T(1,128)}', space=vmem, size = 0x9000, scoped, tag = 'internal scratch']
  %s0 = inlined_call_operand.vmem [shape: f32[2,256], index: 0, kind: input, shape index: {}]
  %s1 = inlined_call_operand.vmem [shape: f32[32,2], index: 1, kind: input, shape index: {}]
  %s2 = inlined_call_operand.vmem [shape: f32[32,32], index: 2, kind: input, shape index: {}]
  %s3 = inlined_call_operand.vmem [shape: f32[32,32], index: 3, kind: input, shape index: {}]
  %s4 = inlined_call_operand.vmem [shape: f32[1,32], index: 4, kind: input, shape index: {}]
  %s5 = inlined_call_operand.vmem [shape: f32[97,1], index: 5, kind: input, shape index: {}]
  %s6 = inlined_call_operand.hbm [shape: f32[1,256], index: 6, kind: output, shape index: {}]
  %s7 = sld [smem:[#allocation0]]
  $region34: #{tpu_custom_call.1} parent=0
    _
  %s9 = ssub.s32 1, %s7
  %s10 = scalar_select 0, %s9, %s7
  $region1: #{tpu_custom_call.1} parent=0
    #allocation2 [shape = 'u8[1024]{0}', space=vmem, size = 0x400, scoped, tag = 'output window, operand 0, single buffered']
    #allocation3 [shape = 's32[1]{0}', space=sflag, size = 0x4, scoped, tag = 'scoped memory for tpu_custom_call.1']
    %11 = vsyncpa [#allocation3], 0
    // Predicated region
    $region2: #{tpu_custom_call.1} parent=1 // pred_check
      _
    $region3: #{tpu_custom_call.1} parent=1 // pred_check_branch
      %13 = sbr.rel (0) target = $region5
    $region4: #{tpu_custom_call.1} parent=1 // pred_region
      _
    $region5: #{tpu_custom_call.1} parent=1 // pred_fallthru
      _
    // Predicated region
    $region6: #{tpu_custom_call.1} parent=1 // pred_check
      _
    $region7: #{tpu_custom_call.1} parent=1 // pred_check_branch
      %15 = sbr.rel (0) target = $region9
    $region8: #{tpu_custom_call.1} parent=1 // pred_region
      _
    $region9: #{tpu_custom_call.1} parent=1 // pred_fallthru
      _
    // Predicated region
    $region10: #{tpu_custom_call.1} parent=1 // pred_check
      _
    $region11: #{tpu_custom_call.1} parent=1 // pred_check_branch
      %17 = sbr.rel (0) target = $region13
    $region12: #{tpu_custom_call.1} parent=1 // pred_region
      _
    $region13: #{tpu_custom_call.1} parent=1 // pred_fallthru
      _
    // Predicated region
    $region14: #{tpu_custom_call.1} parent=1 // pred_check
      _
    $region15: #{tpu_custom_call.1} parent=1 // pred_check_branch
      %19 = sbr.rel (0) target = $region17
    $region16: #{tpu_custom_call.1} parent=1 // pred_region
      _
    $region17: #{tpu_custom_call.1} parent=1 // pred_fallthru
      _
    // Predicated region
    $region18: #{tpu_custom_call.1} parent=1 // pred_check
      _
    $region19: #{tpu_custom_call.1} parent=1 // pred_check_branch
      %21 = sbr.rel (0) target = $region21
    $region20: #{tpu_custom_call.1} parent=1 // pred_region
      _
    $region21: #{tpu_custom_call.1} parent=1 // pred_fallthru
      _
    // Predicated region
    $region22: #{tpu_custom_call.1} parent=1 // pred_check
      _
    $region23: #{tpu_custom_call.1} parent=1 // pred_check_branch
      %23 = sbr.rel (0) target = $region25
    $region24: #{tpu_custom_call.1} parent=1 // pred_region
      _
    $region25: #{tpu_custom_call.1} parent=1 // pred_fallthru
      _
    %v24 = vld [vmem:[%s5] sm:$0xff]
    %v25 = vld [vmem:[%s5 + $0x8] sm:$0xff]
    %v26 = vld [vmem:[%s5 + $0x10] sm:$0xff]
    %v27 = vld [vmem:[%s5 + $0x18] sm:$0xff]
    %v28 = vld [vmem:[%s5 + $0x20] sm:$0xff]
    %v29 = vld [vmem:[%s5 + $0x28] sm:$0xff]
    %v30 = vld [vmem:[%s5 + $0x30] sm:$0xff]
    %v31 = vld [vmem:[%s5 + $0x38] sm:$0xff]
    %v32 = vld [vmem:[%s5 + $0x40] sm:$0xff]
    %v33 = vld [vmem:[%s5 + $0x48] sm:$0xff]
    %v34 = vld [vmem:[%s5 + $0x50] sm:$0xff]
    %v35 = vld [vmem:[%s5 + $0x58] sm:$0xff]
    %v36 = vld [vmem:[%s5 + $0x60] sm:$0x1]
    %v37 = vld [vmem:[%s0] sm:$0xf]
    %v38 = vld [vmem:[%s1] sm:$0xff]
    %v39 = vld [vmem:[%s1 + $0x8] sm:$0xff]
    %v40 = vld [vmem:[%s1 + $0x10] sm:$0xff]
    %v41 = vld [vmem:[%s1 + $0x18] sm:$0xff]
    %43 = vset.pattern.permute.xlu0 0
    %44 = vperm.xlu0 %43, %v24
    %v45 = vpop.permute.xlu0 %44
    %48 = vset.pattern.permute.xlu0 0
    %49 = vperm.xlu0 %48, %v25
    %v50 = vpop.permute.xlu0 %49
    %53 = vset.pattern.permute.xlu0 0
    %54 = vperm.xlu0 %53, %v26
    %v55 = vpop.permute.xlu0 %54
    %58 = vset.pattern.permute.xlu0 0
    %59 = vperm.xlu0 %58, %v27
    %v60 = vpop.permute.xlu0 %59
    %63 = vst [vmem:[#allocation1] ss:$4 sm:$0xff] %v37
    %v64 = vld.sshfl [vmem:[#allocation1] sm:$0xff pattern:$0x73625140]
    %v65 = vld.sshfl [vmem:[#allocation1 + $0x8] sm:$0xff pattern:$0x73625140]
    %vm66 = vcmask 15360
    %v68 = vsel %vm66, %v38, 0
    %v71 = vsel %vm66, %v39, 0
    %v74 = vsel %vm66, %v40, 0
    %v77 = vsel %vm66, %v41, 0
    %vm79 = vcmask 1041408
    %v80 = vsel %vm79, %v64, 0
    %v82 = vsel %vm79, %v65, 0
    %84 = vmatpush.msra.mxu0 0.0
    %85 = vmatpush.msra.mxu0 0.0
    %86 = vmatpush.msra.mxu0 0.0
    %87 = vmatpush.msra.mxu0 0.0
    %88 = vmatpush.msra.mxu0 0.0
    %89 = vmatpush.msra.mxu0 0.0
    %90 = vmatpush.msra.mxu0 0.0
    %91 = vmatpush.msra.mxu0 0.0
    %92 = vmatpush.msra.mxu0 0.0
    %93 = vmatpush.msra.mxu0 0.0
    %94 = vmatpush.msra.mxu0 0.0
    %95 = vmatpush.msra.mxu0 0.0
    %96 = vmatpush.msra.mxu0 0.0
    %97 = vmatpush.msra.mxu0 0.0
    %98 = vmatpush.msra.mxu0 0.0
    %99 = vmatpush.msra.mxu0 %v80
    %100 = vmatmul.f32.gmra.mxu0 %v68
    %v101 = vpop.f32.mrf.mxu0
    %v102 = vadd.f32 %v45, %v101
    %103 = vmatmul.f32.gmra.mxu0 %v71
    %v104 = vpop.f32.mrf.mxu0
    %v105 = vadd.f32 %v50, %v104
    %106 = vmatmul.f32.gmra.mxu0 %v74
    %v107 = vpop.f32.mrf.mxu0
    %v108 = vadd.f32 %v55, %v107
    %109 = vmatmul.f32.gmra.mxu0 %v77
    %v110 = vpop.f32.mrf.mxu0
    %v111 = vadd.f32 %v60, %v110
    %112 = vdwg.mxu0
    %113 = vmatpush.msra.mxu0 0.0
    %114 = vmatpush.msra.mxu0 0.0
    %115 = vmatpush.msra.mxu0 0.0
    %116 = vmatpush.msra.mxu0 0.0
    %117 = vmatpush.msra.mxu0 0.0
    %118 = vmatpush.msra.mxu0 0.0
    %119 = vmatpush.msra.mxu0 0.0
    %120 = vmatpush.msra.mxu0 0.0
    %121 = vmatpush.msra.mxu0 0.0
    %122 = vmatpush.msra.mxu0 0.0
    %123 = vmatpush.msra.mxu0 0.0
    %124 = vmatpush.msra.mxu0 0.0
    %125 = vmatpush.msra.mxu0 0.0
    %126 = vmatpush.msra.mxu0 0.0
    %127 = vmatpush.msra.mxu0 0.0
    %128 = vmatpush.msra.mxu0 %v82
    %129 = vmatmul.f32.gmra.mxu0 %v68
    %v130 = vpop.f32.mrf.mxu0
    %v131 = vadd.f32 %v45, %v130
    %132 = vmatmul.f32.gmra.mxu0 %v71
    %v133 = vpop.f32.mrf.mxu0
    %v134 = vadd.f32 %v50, %v133
    %135 = vmatmul.f32.gmra.mxu0 %v74
    %v136 = vpop.f32.mrf.mxu0
    %v137 = vadd.f32 %v55, %v136
    %138 = vmatmul.f32.gmra.mxu0 %v77
    %v139 = vpop.f32.mrf.mxu0
    %v140 = vadd.f32 %v60, %v139
    %141 = vdwg.mxu0
    %v142 = vtanh.pop %v102
    %v143 = vtanh.pop %v131
    %v144 = vtanh.pop %v105
    %v145 = vtanh.pop %v134
    %v146 = vtanh.pop %v108
    %v147 = vtanh.pop %v137
    %v148 = vtanh.pop %v111
    %v149 = vtanh.pop %v140
    %v150 = vld [vmem:[%s2] sm:$0xff]
    %v151 = vld [vmem:[%s2 + $0x8] sm:$0xff]
    %v152 = vld [vmem:[%s2 + $0x10] sm:$0xff]
    %v153 = vld [vmem:[%s2 + $0x18] sm:$0xff]
    %155 = vset.pattern.permute.xlu0 0
    %156 = vperm.xlu0 %155, %v28
    %v157 = vpop.permute.xlu0 %156
    %160 = vset.pattern.permute.xlu0 0
    %161 = vperm.xlu0 %160, %v29
    %v162 = vpop.permute.xlu0 %161
    %165 = vset.pattern.permute.xlu0 0
    %166 = vperm.xlu0 %165, %v30
    %v167 = vpop.permute.xlu0 %166
    %170 = vset.pattern.permute.xlu0 0
    %171 = vperm.xlu0 %170, %v31
    %v172 = vpop.permute.xlu0 %171
    %vm174 = vcmask 261120
    %v176 = vsel %vm174, %v150, 0
    %v179 = vsel %vm174, %v151, 0
    %v182 = vsel %vm174, %v152, 0
    %v185 = vsel %vm174, %v153, 0
    %187 = vmatpush.msra.mxu0 0.0
    %188 = vmatpush.msra.mxu0 0.0
    %189 = vmatpush.msra.mxu0 0.0
    %190 = vmatpush.msra.mxu0 0.0
    %191 = vmatpush.msra.mxu0 0.0
    %192 = vmatpush.msra.mxu0 0.0
    %193 = vmatpush.msra.mxu0 0.0
    %194 = vmatpush.msra.mxu0 0.0
    %195 = vmatpush.msra.mxu0 0.0
    %196 = vmatpush.msra.mxu0 0.0
    %197 = vmatpush.msra.mxu0 0.0
    %198 = vmatpush.msra.mxu0 0.0
    %199 = vmatpush.msra.mxu0 %v148
    %200 = vmatpush.msra.mxu0 %v146
    %201 = vmatpush.msra.mxu0 %v144
    %202 = vmatpush.msra.mxu0 %v142
    %203 = vmatmul.f32.gmra.mxu0 %v176
    %v204 = vpop.f32.mrf.mxu0
    %v205 = vadd.f32 %v157, %v204
    %206 = vmatmul.f32.gmra.mxu0 %v179
    %v207 = vpop.f32.mrf.mxu0
    %v208 = vadd.f32 %v162, %v207
    %209 = vmatmul.f32.gmra.mxu0 %v182
    %v210 = vpop.f32.mrf.mxu0
    %v211 = vadd.f32 %v167, %v210
    %212 = vmatmul.f32.gmra.mxu0 %v185
    %v213 = vpop.f32.mrf.mxu0
    %v214 = vadd.f32 %v172, %v213
    %215 = vdwg.mxu0
    %216 = vmatpush.msra.mxu0 0.0
    %217 = vmatpush.msra.mxu0 0.0
    %218 = vmatpush.msra.mxu0 0.0
    %219 = vmatpush.msra.mxu0 0.0
    %220 = vmatpush.msra.mxu0 0.0
    %221 = vmatpush.msra.mxu0 0.0
    %222 = vmatpush.msra.mxu0 0.0
    %223 = vmatpush.msra.mxu0 0.0
    %224 = vmatpush.msra.mxu0 0.0
    %225 = vmatpush.msra.mxu0 0.0
    %226 = vmatpush.msra.mxu0 0.0
    %227 = vmatpush.msra.mxu0 0.0
    %228 = vmatpush.msra.mxu0 %v149
    %229 = vmatpush.msra.mxu0 %v147
    %230 = vmatpush.msra.mxu0 %v145
    %231 = vmatpush.msra.mxu0 %v143
    %232 = vmatmul.f32.gmra.mxu0 %v176
    %v233 = vpop.f32.mrf.mxu0
    %v234 = vadd.f32 %v157, %v233
    %235 = vmatmul.f32.gmra.mxu0 %v179
    %v236 = vpop.f32.mrf.mxu0
    %v237 = vadd.f32 %v162, %v236
    %238 = vmatmul.f32.gmra.mxu0 %v182
    %v239 = vpop.f32.mrf.mxu0
    %v240 = vadd.f32 %v167, %v239
    %241 = vmatmul.f32.gmra.mxu0 %v185
    %v242 = vpop.f32.mrf.mxu0
    %v243 = vadd.f32 %v172, %v242
    %244 = vdwg.mxu0
    %v245 = vtanh.pop %v205
    %v246 = vtanh.pop %v234
    %v247 = vtanh.pop %v208
    %v248 = vtanh.pop %v237
    %v249 = vtanh.pop %v211
    %v250 = vtanh.pop %v240
    %v251 = vtanh.pop %v214
    %v252 = vtanh.pop %v243
    %v253 = vld [vmem:[%s3] sm:$0xff]
    %v254 = vld [vmem:[%s3 + $0x8] sm:$0xff]
    %v255 = vld [vmem:[%s3 + $0x10] sm:$0xff]
    %v256 = vld [vmem:[%s3 + $0x18] sm:$0xff]
    %258 = vset.pattern.permute.xlu0 0
    %259 = vperm.xlu0 %258, %v32
    %v260 = vpop.permute.xlu0 %259
    %263 = vset.pattern.permute.xlu0 0
    %264 = vperm.xlu0 %263, %v33
    %v265 = vpop.permute.xlu0 %264
    %268 = vset.pattern.permute.xlu0 0
    %269 = vperm.xlu0 %268, %v34
    %v270 = vpop.permute.xlu0 %269
    %273 = vset.pattern.permute.xlu0 0
    %274 = vperm.xlu0 %273, %v35
    %v275 = vpop.permute.xlu0 %274
    %v278 = vsel %vm174, %v253, 0
    %v281 = vsel %vm174, %v254, 0
    %v284 = vsel %vm174, %v255, 0
    %v287 = vsel %vm174, %v256, 0
    %289 = vmatpush.msra.mxu0 0.0
    %290 = vmatpush.msra.mxu0 0.0
    %291 = vmatpush.msra.mxu0 0.0
    %292 = vmatpush.msra.mxu0 0.0
    %293 = vmatpush.msra.mxu0 0.0
    %294 = vmatpush.msra.mxu0 0.0
    %295 = vmatpush.msra.mxu0 0.0
    %296 = vmatpush.msra.mxu0 0.0
    %297 = vmatpush.msra.mxu0 0.0
    %298 = vmatpush.msra.mxu0 0.0
    %299 = vmatpush.msra.mxu0 0.0
    %300 = vmatpush.msra.mxu0 0.0
    %301 = vmatpush.msra.mxu0 %v251
    %302 = vmatpush.msra.mxu0 %v249
    %303 = vmatpush.msra.mxu0 %v247
    %304 = vmatpush.msra.mxu0 %v245
    %305 = vmatmul.f32.gmra.mxu0 %v278
    %v306 = vpop.f32.mrf.mxu0
    %v307 = vadd.f32 %v260, %v306
    %308 = vmatmul.f32.gmra.mxu0 %v281
    %v309 = vpop.f32.mrf.mxu0
    %v310 = vadd.f32 %v265, %v309
    %311 = vmatmul.f32.gmra.mxu0 %v284
    %v312 = vpop.f32.mrf.mxu0
    %v313 = vadd.f32 %v270, %v312
    %314 = vmatmul.f32.gmra.mxu0 %v287
    %v315 = vpop.f32.mrf.mxu0
    %v316 = vadd.f32 %v275, %v315
    %317 = vdwg.mxu0
    %318 = vmatpush.msra.mxu0 0.0
    %319 = vmatpush.msra.mxu0 0.0
    %320 = vmatpush.msra.mxu0 0.0
    %321 = vmatpush.msra.mxu0 0.0
    %322 = vmatpush.msra.mxu0 0.0
    %323 = vmatpush.msra.mxu0 0.0
    %324 = vmatpush.msra.mxu0 0.0
    %325 = vmatpush.msra.mxu0 0.0
    %326 = vmatpush.msra.mxu0 0.0
    %327 = vmatpush.msra.mxu0 0.0
    %328 = vmatpush.msra.mxu0 0.0
    %329 = vmatpush.msra.mxu0 0.0
    %330 = vmatpush.msra.mxu0 %v252
    %331 = vmatpush.msra.mxu0 %v250
    %332 = vmatpush.msra.mxu0 %v248
    %333 = vmatpush.msra.mxu0 %v246
    %334 = vmatmul.f32.gmra.mxu0 %v278
    %v335 = vpop.f32.mrf.mxu0
    %v336 = vadd.f32 %v260, %v335
    %337 = vmatmul.f32.gmra.mxu0 %v281
    %v338 = vpop.f32.mrf.mxu0
    %v339 = vadd.f32 %v265, %v338
    %340 = vmatmul.f32.gmra.mxu0 %v284
    %v341 = vpop.f32.mrf.mxu0
    %v342 = vadd.f32 %v270, %v341
    %343 = vmatmul.f32.gmra.mxu0 %v287
    %v344 = vpop.f32.mrf.mxu0
    %v345 = vadd.f32 %v275, %v344
    %346 = vdwg.mxu0
    %v347 = vtanh.pop %v307
    %v348 = vtanh.pop %v336
    %v349 = vtanh.pop %v310
    %v350 = vtanh.pop %v339
    %v351 = vtanh.pop %v313
    %v352 = vtanh.pop %v342
    %v353 = vtanh.pop %v316
    %v354 = vtanh.pop %v345
    %v355 = vld [vmem:[%s4] sm:$0x1]
    %357 = vset.pattern.permute.xlu0 0
    %358 = vperm.xlu0 %357, %v36
    %v359 = vpop.permute.xlu0 %358
    %v362 = vsel %vm174, %v355, 0
    %364 = vmatpush.msra.mxu0 0.0
    %365 = vmatpush.msra.mxu0 0.0
    %366 = vmatpush.msra.mxu0 0.0
    %367 = vmatpush.msra.mxu0 0.0
    %368 = vmatpush.msra.mxu0 0.0
    %369 = vmatpush.msra.mxu0 0.0
    %370 = vmatpush.msra.mxu0 0.0
    %371 = vmatpush.msra.mxu0 0.0
    %372 = vmatpush.msra.mxu0 0.0
    %373 = vmatpush.msra.mxu0 0.0
    %374 = vmatpush.msra.mxu0 0.0
    %375 = vmatpush.msra.mxu0 0.0
    %376 = vmatpush.msra.mxu0 %v353
    %377 = vmatpush.msra.mxu0 %v351
    %378 = vmatpush.msra.mxu0 %v349
    %379 = vmatpush.msra.mxu0 %v347
    %380 = vmatmul.f32.gmra.mxu0 %v362
    %v381 = vpop.f32.mrf.mxu0
    %v382 = vadd.f32 %v359, %v381
    %383 = vdwg.mxu0
    %384 = vmatpush.msra.mxu0 0.0
    %385 = vmatpush.msra.mxu0 0.0
    %386 = vmatpush.msra.mxu0 0.0
    %387 = vmatpush.msra.mxu0 0.0
    %388 = vmatpush.msra.mxu0 0.0
    %389 = vmatpush.msra.mxu0 0.0
    %390 = vmatpush.msra.mxu0 0.0
    %391 = vmatpush.msra.mxu0 0.0
    %392 = vmatpush.msra.mxu0 0.0
    %393 = vmatpush.msra.mxu0 0.0
    %394 = vmatpush.msra.mxu0 0.0
    %395 = vmatpush.msra.mxu0 0.0
    %396 = vmatpush.msra.mxu0 %v354
    %397 = vmatpush.msra.mxu0 %v352
    %398 = vmatpush.msra.mxu0 %v350
    %399 = vmatpush.msra.mxu0 %v348
    %400 = vmatmul.f32.gmra.mxu0 %v362
    %v401 = vpop.f32.mrf.mxu0
    %v402 = vadd.f32 %v359, %v401
    %403 = vdwg.mxu0
    %v406 = vrot.slane %v402, 7
    %vm407 = vcmask 1040384
    %v408 = vsel %vm407, %v382, %v406
    %v410 = vlaneseq
    %vm411 = vcmp.ge.s32.totalorder %v410, 0
    %vm412 = vcmp.lt.s32.totalorder %v410, 256
    %vm413 = vmand %vm411, %vm412
    %414 = vst.msk [vmem:[#allocation2] sm:$0x3] %vm413, %v408
    // Predicated region
    $region26: #{tpu_custom_call.1} parent=1 // pred_check
      _
    $region27: #{tpu_custom_call.1} parent=1 // pred_check_branch
      %416 = sbr.rel (0) target = $region29
    $region28: #{tpu_custom_call.1} parent=1 // pred_region
      %418 = vsyncadd [#allocation3], 0
      %s420 = sshll.u32 [#allocation2], 4
      %s421 = int_to_ptr.vmem [resolvable:$true] %s420
      %s422 = sshll.u32 %s6, 4
      %s423 = int_to_ptr.hbm [resolvable:$true] %s422
      %425 = dma.vmem_to_hbm [thread:$0]  %s421, 32, %s423, [#allocation3]
    $region29: #{tpu_custom_call.1} parent=1 // pred_fallthru
      _
    // Predicated region
    $region30: #{tpu_custom_call.1} parent=1 // pred_check
      _
    $region31: #{tpu_custom_call.1} parent=1 // pred_check_branch
      %427 = sbr.rel (0) target = $region33
    $region32: #{tpu_custom_call.1} parent=1 // pred_region
      %429 = dma.done [#allocation3], 32
    $region33: #{tpu_custom_call.1} parent=1 // pred_fallthru
      _
    %430 = vsyncpa [#allocation3], 1

</llo_original>
